<compile_context>
chip_gen: v5e
topology: v5e:2x2
jax: 0.10.0
libtpu: 0.0.40
codegen_flags: <defaults>
</compile_context>

<pallas_src>
import functools

import jax
import jax.numpy as jnp
from jax import lax
from jax.experimental import pallas as pl
from jax.experimental.pallas import tpu as pltpu


def _bottleneck_kernel(x_ref, w1_ref, b1_ref, w2_ref, b2_ref, w3_ref, b3_ref,
                       mask_ref, o_ref, *, H, W, b_tile):
    # x_ref   : (C_in, L)  bf16, L = b_tile*H*W (batch*space packed on lanes)
    # w1_ref  : (Pp, C_in)   bf16  conv1 weight, bn1 scale folded, planes padded to Pp
    # b1_ref  : (Pp, 1)      f32   bn1 bias
    # w2_ref  : (Pp, 9*Pp)   bf16  conv2 tap-stacked weight, bn2 scale folded
    # b2_ref  : (Pp, 1)      f32   bn2 bias
    # w3_ref  : (C_out, Pp)  bf16  conv3 weight, bn3 scale folded
    # b3_ref  : (C_out, 1)   f32   bn3 bias
    # mask_ref: (9, L)       f32   per-tap validity masks (row & column combined)
    # o_ref   : (C_out, L)   bf16
    L = b_tile * H * W

    x16 = x_ref[...]                                               # (C_in, L) bf16

    # ---- conv1 (1x1) + bn1 (folded) + relu : one MXU matmul ----
    a = jnp.dot(w1_ref[...], x16, preferred_element_type=jnp.float32)
    a = jnp.maximum(a + b1_ref[...], 0.0)                          # (Pp, L) f32

    # ---- conv2 (3x3, pad=1, stride=1) + bn2 (folded) + relu ----
    # Each tap is a circular lane roll of `a`; the precomputed mask zeroes
    # positions whose source fell off the image (including contamination from
    # the neighbouring packed image).  All 9 taps are contracted in ONE matmul.
    masks = mask_ref[...]                                          # (9, L) f32
    taps = []
    t = 0
    for dy in (-1, 0, 1):
        for dx in (-1, 0, 1):
            s = dy * W + dx
            if s == 0:
                taps.append(a)                                     # centre tap: no shift, all-ones mask
            else:
                shifted = pltpu.roll(a, shift=(-s) % L, axis=1)    # shifted[p] = a[(p + s) % L]
                taps.append(shifted * masks[t:t + 1, :])
            t += 1
    im2col = jnp.concatenate(taps, axis=0).astype(jnp.bfloat16)    # (9*Pp, L) bf16
    b = jnp.dot(w2_ref[...], im2col, preferred_element_type=jnp.float32)
    b = jnp.maximum(b + b2_ref[...], 0.0)                          # (Pp, L) f32

    # ---- conv3 (1x1) + bn3 (folded) ----
    c = jnp.dot(w3_ref[...], b.astype(jnp.bfloat16),
                preferred_element_type=jnp.float32) + b3_ref[...]  # (C_out, L) f32

    # ---- identity residual + relu ----
    o_ref[...] = jnp.maximum(c + x16.astype(jnp.float32), 0.0).astype(o_ref.dtype)


def _fold_bn(gamma, beta, mean, var, eps):
    scale = gamma / jnp.sqrt(var + eps)
    bias = beta - mean * scale
    return scale, bias


def _round_up(v, m):
    return (v + m - 1) // m * m


def _pick_b_tile(N, HW, C_in, C_out, planes_p, budget_bytes=24 << 20):
    # Largest packing factor that divides N, keeps the lane block 128-aligned,
    # and fits a conservative VMEM budget (<= the 32 MiB scoped default, hence
    # also safe on v7x).  When N allows it, keep at least two grid steps so
    # the "parallel" batch axis can load-balance across v7x's two TensorCores.
    cap = N if N < 4 else N // 2
    best = 1
    for b in range(1, cap + 1):
        if N % b:
            continue
        if b != N and (b * HW) % 128 != 0:
            continue
        L = b * HW
        est = (2 * 2 * C_in * L            # x block (bf16, double-buffered)
               + 2 * 2 * C_out * L         # out block (bf16, double-buffered)
               + 9 * L * 4                 # tap validity masks (f32)
               + planes_p * L * 4          # conv1 activation (f32)
               + 9 * planes_p * L * 6      # taps (f32) + im2col (bf16)
               + planes_p * L * 4          # conv2 activation (f32)
               + C_out * L * 4)            # conv3 activation (f32)
        if est <= budget_bytes:
            best = b
    return best


def bottleneck_forward(x, params, eps=1e-5):
    """Bottleneck forward (stride=1, identity residual), eval-mode BatchNorm."""
    N, C_in, H, W = x.shape
    w1, w2, w3 = params["conv1_w"], params["conv2_w"], params["conv3_w"]
    planes = w1.shape[0]
    C_out = w3.shape[0]
    if C_in != C_out:
        # TODO(synk): stride>1 and the downsample (1x1 conv + BN on x) residual
        # path are not implemented; only the identity-residual configuration is.
        raise NotImplementedError("only stride=1 / identity-residual Bottleneck supported")
    HW = H * W
    planes_p = _round_up(planes, 8)        # sublane-aligned channel count

    s1, t1 = _fold_bn(params["bn1_g"], params["bn1_b"], params["bn1_m"], params["bn1_v"], eps)
    s2, t2 = _fold_bn(params["bn2_g"], params["bn2_b"], params["bn2_m"], params["bn2_v"], eps)
    s3, t3 = _fold_bn(params["bn3_g"], params["bn3_b"], params["bn3_m"], params["bn3_v"], eps)

    # BN folded into conv weights host-side; channels zero-padded to planes_p.
    w1m = jnp.zeros((planes_p, C_in), jnp.float32).at[:planes].set(w1[:, :, 0, 0] * s1[:, None])
    b1v = jnp.zeros((planes_p, 1), jnp.float32).at[:planes].set(t1[:, None])
    w2f = w2 * s2[:, None, None, None]                       # (planes, planes, 3, 3)
    w2t = jnp.transpose(w2f, (0, 2, 3, 1))                   # (o, ky, kx, i)
    w2p = jnp.zeros((planes_p, 3, 3, planes_p), jnp.float32).at[:planes, :, :, :planes].set(w2t)
    w2s = w2p.reshape(planes_p, 9 * planes_p)                # [o, tap*Pp + i]
    b2v = jnp.zeros((planes_p, 1), jnp.float32).at[:planes].set(t2[:, None])
    w3m = jnp.zeros((C_out, planes_p), jnp.float32).at[:, :planes].set(w3[:, :, 0, 0] * s3[:, None])
    b3v = t3[:, None].astype(jnp.float32)

    b_tile = _pick_b_tile(N, HW, C_in, C_out, planes_p)
    L = b_tile * HW

    # Per-tap validity masks (period HW, tiled across the packed images); they
    # also zero any cross-image contamination introduced by the circular rolls.
    p = jnp.arange(HW, dtype=jnp.int32)
    yy, xx = p // W, p % W
    rows = []
    for dy in (-1, 0, 1):
        for dx in (-1, 0, 1):
            rows.append((yy + dy >= 0) & (yy + dy < H) & (xx + dx >= 0) & (xx + dx < W))
    masks = jnp.tile(jnp.stack(rows).astype(jnp.float32), (1, b_tile))   # (9, L)

    # Batch-packed, lane-dense bf16 activations: (C_in, N*H*W), image-major lanes.
    x2d = jnp.transpose(x, (1, 0, 2, 3)).reshape(C_in, N * HW).astype(jnp.bfloat16)

    flops = 2 * N * HW * (planes_p * C_in + planes_p * 9 * planes_p + C_out * planes_p)
    bytes_accessed = ((x2d.size + N * HW * C_out) * 2
                      + (w1m.size + w2s.size + w3m.size) * 2
                      + (b1v.size + b2v.size + b3v.size + masks.size) * 4)

    kernel = functools.partial(_bottleneck_kernel, H=H, W=W, b_tile=b_tile)
    out2d = pl.pallas_call(
        kernel,
        out_shape=jax.ShapeDtypeStruct((C_out, N * HW), jnp.bfloat16),
        grid=(N // b_tile,),
        in_specs=[
            pl.BlockSpec((C_in, L), lambda n: (0, n)),               # x (b_tile images)
            pl.BlockSpec((planes_p, C_in), lambda n: (0, 0)),        # conv1 w (+bn1)
            pl.BlockSpec((planes_p, 1), lambda n: (0, 0)),           # bn1 bias
            pl.BlockSpec((planes_p, 9 * planes_p), lambda n: (0, 0)),# conv2 tap-stacked w (+bn2)
            pl.BlockSpec((planes_p, 1), lambda n: (0, 0)),           # bn2 bias
            pl.BlockSpec((C_out, planes_p), lambda n: (0, 0)),       # conv3 w (+bn3)
            pl.BlockSpec((C_out, 1), lambda n: (0, 0)),              # bn3 bias
            pl.BlockSpec((9, L), lambda n: (0, 0)),                  # tap validity masks
        ],
        out_specs=pl.BlockSpec((C_out, L), lambda n: (0, n)),
        compiler_params=pltpu.CompilerParams(dimension_semantics=("parallel",)),
        cost_estimate=pl.CostEstimate(flops=int(flops), transcendentals=0,
                                      bytes_accessed=int(bytes_accessed)),
    )(x2d, w1m.astype(jnp.bfloat16), b1v, w2s.astype(jnp.bfloat16), b2v,
      w3m.astype(jnp.bfloat16), b3v, masks)

    out = out2d.reshape(C_out, N, H, W).transpose(1, 0, 2, 3)
    return out.astype(x.dtype)


def bottleneck_reference(x, params, eps=1e-5):
    def bn(y, g, b, m, v):
        inv = g / jnp.sqrt(v + eps)
        return (y - m[None, :, None, None]) * inv[None, :, None, None] + b[None, :, None, None]

    def conv(y, w, pad):
        return lax.conv_general_dilated(
            y, w, window_strides=(1, 1), padding=((pad, pad), (pad, pad)),
            dimension_numbers=("NCHW", "OIHW", "NCHW"))

    out = jax.nn.relu(bn(conv(x, params["conv1_w"], 0),
                         params["bn1_g"], params["bn1_b"], params["bn1_m"], params["bn1_v"]))
    out = jax.nn.relu(bn(conv(out, params["conv2_w"], 1),
                         params["bn2_g"], params["bn2_b"], params["bn2_m"], params["bn2_v"]))
    out = bn(conv(out, params["conv3_w"], 0),
             params["bn3_g"], params["bn3_b"], params["bn3_m"], params["bn3_v"])
    return jax.nn.relu(out + x)


if __name__ == "__main__":
    key = jax.random.PRNGKey(0)
    keys = jax.random.split(key, 8)

    # Identity-residual Bottleneck: inplanes == planes * expansion(4)
    N, inplanes, planes, H, W = 2, 16, 4, 16, 16
    C_out = planes * 4

    x = jax.random.normal(keys[0], (N, inplanes, H, W), dtype=jnp.float32)

    def bn_params(k, dim):
        k1, k2, k3, k4 = jax.random.split(k, 4)
        return dict(
            g=jax.random.uniform(k1, (dim,), dtype=jnp.float32, minval=0.5, maxval=1.5),
            b=0.1 * jax.random.normal(k2, (dim,), dtype=jnp.float32),
            m=0.1 * jax.random.normal(k3, (dim,), dtype=jnp.float32),
            v=jax.random.uniform(k4, (dim,), dtype=jnp.float32, minval=0.5, maxval=1.5))

    params = {
        "conv1_w": jax.random.normal(keys[1], (planes, inplanes, 1, 1), jnp.float32) / (inplanes ** 0.5),
        "conv2_w": jax.random.normal(keys[2], (planes, planes, 3, 3), jnp.float32) / ((planes * 9) ** 0.5),
        "conv3_w": jax.random.normal(keys[3], (C_out, planes, 1, 1), jnp.float32) / (planes ** 0.5),
    }
    for name, kk, dim in (("bn1", keys[4], planes), ("bn2", keys[5], planes), ("bn3", keys[6], C_out)):
        pbn = bn_params(kk, dim)
        params[f"{name}_g"], params[f"{name}_b"] = pbn["g"], pbn["b"]
        params[f"{name}_m"], params[f"{name}_v"] = pbn["m"], pbn["v"]

    out = bottleneck_forward(x, params)
    out = jax.block_until_ready(out)

    ref = bottleneck_reference(x, params)
    assert out.shape == (N, C_out, H, W), out.shape
    max_err = float(jnp.max(jnp.abs(out - ref)))
    # bf16 matmul operands (f32 accumulation) -> tolerance loosened vs the f32 reference.
    assert jnp.allclose(out, ref, atol=1e-1, rtol=1e-1), max_err

    print("KERNEL_OK")
</pallas_src>

<mosaic_0001>
module attributes {stable_mosaic.version = 11 : i64} {
  func.func @_bottleneck_kernel(%arg0: i32, %arg1: memref<16x512xbf16, #tpu.memory_space<vmem>>, %arg2: memref<8x16xbf16, #tpu.memory_space<vmem>>, %arg3: memref<8x1xf32, #tpu.memory_space<vmem>>, %arg4: memref<8x72xbf16, #tpu.memory_space<vmem>>, %arg5: memref<8x1xf32, #tpu.memory_space<vmem>>, %arg6: memref<16x8xbf16, #tpu.memory_space<vmem>>, %arg7: memref<16x1xf32, #tpu.memory_space<vmem>>, %arg8: memref<9x512xf32, #tpu.memory_space<vmem>>, %arg9: memref<16x512xbf16, #tpu.memory_space<vmem>>) attributes {dimension_semantics = [#tpu.dimension_semantics<parallel>], iteration_bounds = array<i64: 1>, scalar_prefetch = 0 : i64, scratch_operands = 0 : i64, tpu.core_type = #tpu.core_type<tc>, window_params = [{transform_indices = @transform_0, window_bounds = array<i64: 16, 512>}, {pipeline_mode = #tpu.pipeline_mode<synchronous>, transform_indices = @transform_1, window_bounds = array<i64: 8, 16>}, {pipeline_mode = #tpu.pipeline_mode<synchronous>, transform_indices = @transform_2, window_bounds = array<i64: 8, 1>}, {pipeline_mode = #tpu.pipeline_mode<synchronous>, transform_indices = @transform_3, window_bounds = array<i64: 8, 72>}, {pipeline_mode = #tpu.pipeline_mode<synchronous>, transform_indices = @transform_4, window_bounds = array<i64: 8, 1>}, {pipeline_mode = #tpu.pipeline_mode<synchronous>, transform_indices = @transform_5, window_bounds = array<i64: 16, 8>}, {pipeline_mode = #tpu.pipeline_mode<synchronous>, transform_indices = @transform_6, window_bounds = array<i64: 16, 1>}, {pipeline_mode = #tpu.pipeline_mode<synchronous>, transform_indices = @transform_7, window_bounds = array<i64: 9, 512>}, {transform_indices = @transform_8, window_bounds = array<i64: 16, 512>}]} {
    %c0 = arith.constant 0 : index
    %c0_0 = arith.constant 0 : index
    %0 = vector.load %arg1[%c0, %c0_0] : memref<16x512xbf16, #tpu.memory_space<vmem>>, vector<16x512xbf16>
    %c0_1 = arith.constant 0 : index
    %c0_2 = arith.constant 0 : index
    %1 = vector.load %arg2[%c0_1, %c0_2] : memref<8x16xbf16, #tpu.memory_space<vmem>>, vector<8x16xbf16>
    %cst = arith.constant dense<0.000000e+00> : vector<8x512xf32>
    %2 = tpu.matmul %1, %0, %cst {dimension_numbers = #tpu.dot_dimension_numbers<[1], [0], [0], [1], [0, 0, 1, 1], [], []>} : vector<8x16xbf16>, vector<16x512xbf16>, vector<8x512xf32> -> vector<8x512xf32>
    %c0_3 = arith.constant 0 : index
    %c0_4 = arith.constant 0 : index
    %3 = vector.load %arg3[%c0_3, %c0_4] : memref<8x1xf32, #tpu.memory_space<vmem>>, vector<8x1xf32>
    %4 = vector.broadcast %3 : vector<8x1xf32> to vector<8x512xf32>
    %5 = arith.addf %2, %4 : vector<8x512xf32>
    %cst_5 = arith.constant 0.000000e+00 : f32
    %6 = vector.broadcast %cst_5 : f32 to vector<8x512xf32>
    %7 = arith.maximumf %5, %6 : vector<8x512xf32>
    %c0_6 = arith.constant 0 : index
    %c0_7 = arith.constant 0 : index
    %8 = vector.load %arg8[%c0_6, %c0_7] : memref<9x512xf32, #tpu.memory_space<vmem>>, vector<9x512xf32>
    %c17_i32 = arith.constant 17 : i32
    %9 = tpu.dynamic_rotate %7 by %c17_i32 dim 1 : vector<8x512xf32>, i32 -> vector<8x512xf32>
    %10 = vector.extract_strided_slice %8 {offsets = [0, 0], sizes = [1, 512], strides = [1, 1]} : vector<9x512xf32> to vector<1x512xf32>
    %11 = vector.broadcast %10 : vector<1x512xf32> to vector<8x512xf32>
    %12 = arith.mulf %9, %11 : vector<8x512xf32>
    %c16_i32 = arith.constant 16 : i32
    %13 = tpu.dynamic_rotate %7 by %c16_i32 dim 1 : vector<8x512xf32>, i32 -> vector<8x512xf32>
    %14 = vector.extract_strided_slice %8 {offsets = [1, 0], sizes = [1, 512], strides = [1, 1]} : vector<9x512xf32> to vector<1x512xf32>
    %15 = vector.broadcast %14 : vector<1x512xf32> to vector<8x512xf32>
    %16 = arith.mulf %13, %15 : vector<8x512xf32>
    %c15_i32 = arith.constant 15 : i32
    %17 = tpu.dynamic_rotate %7 by %c15_i32 dim 1 : vector<8x512xf32>, i32 -> vector<8x512xf32>
    %18 = vector.extract_strided_slice %8 {offsets = [2, 0], sizes = [1, 512], strides = [1, 1]} : vector<9x512xf32> to vector<1x512xf32>
    %19 = vector.broadcast %18 : vector<1x512xf32> to vector<8x512xf32>
    %20 = arith.mulf %17, %19 : vector<8x512xf32>
    %c1_i32 = arith.constant 1 : i32
    %21 = tpu.dynamic_rotate %7 by %c1_i32 dim 1 : vector<8x512xf32>, i32 -> vector<8x512xf32>
    %22 = vector.extract_strided_slice %8 {offsets = [3, 0], sizes = [1, 512], strides = [1, 1]} : vector<9x512xf32> to vector<1x512xf32>
    %23 = vector.broadcast %22 : vector<1x512xf32> to vector<8x512xf32>
    %24 = arith.mulf %21, %23 : vector<8x512xf32>
    %c511_i32 = arith.constant 511 : i32
    %25 = tpu.dynamic_rotate %7 by %c511_i32 dim 1 : vector<8x512xf32>, i32 -> vector<8x512xf32>
    %26 = vector.extract_strided_slice %8 {offsets = [5, 0], sizes = [1, 512], strides = [1, 1]} : vector<9x512xf32> to vector<1x512xf32>
    %27 = vector.broadcast %26 : vector<1x512xf32> to vector<8x512xf32>
    %28 = arith.mulf %25, %27 : vector<8x512xf32>
    %c497_i32 = arith.constant 497 : i32
    %29 = tpu.dynamic_rotate %7 by %c497_i32 dim 1 : vector<8x512xf32>, i32 -> vector<8x512xf32>
    %30 = vector.extract_strided_slice %8 {offsets = [6, 0], sizes = [1, 512], strides = [1, 1]} : vector<9x512xf32> to vector<1x512xf32>
    %31 = vector.broadcast %30 : vector<1x512xf32> to vector<8x512xf32>
    %32 = arith.mulf %29, %31 : vector<8x512xf32>
    %c496_i32 = arith.constant 496 : i32
    %33 = tpu.dynamic_rotate %7 by %c496_i32 dim 1 : vector<8x512xf32>, i32 -> vector<8x512xf32>
    %34 = vector.extract_strided_slice %8 {offsets = [7, 0], sizes = [1, 512], strides = [1, 1]} : vector<9x512xf32> to vector<1x512xf32>
    %35 = vector.broadcast %34 : vector<1x512xf32> to vector<8x512xf32>
    %36 = arith.mulf %33, %35 : vector<8x512xf32>
    %c495_i32 = arith.constant 495 : i32
    %37 = tpu.dynamic_rotate %7 by %c495_i32 dim 1 : vector<8x512xf32>, i32 -> vector<8x512xf32>
    %38 = vector.extract_strided_slice %8 {offsets = [8, 0], sizes = [1, 512], strides = [1, 1]} : vector<9x512xf32> to vector<1x512xf32>
    %39 = vector.broadcast %38 : vector<1x512xf32> to vector<8x512xf32>
    %40 = arith.mulf %37, %39 : vector<8x512xf32>
    %41 = tpu.concatenate %12, %16, %20, %24, %7, %28, %32, %36, %40 in 0 : vector<8x512xf32>, vector<8x512xf32>, vector<8x512xf32>, vector<8x512xf32>, vector<8x512xf32>, vector<8x512xf32>, vector<8x512xf32>, vector<8x512xf32>, vector<8x512xf32> -> vector<72x512xf32>
    %42 = arith.truncf %41 : vector<72x512xf32> to vector<72x512xbf16>
    %c0_8 = arith.constant 0 : index
    %c0_9 = arith.constant 0 : index
    %43 = vector.load %arg4[%c0_8, %c0_9] : memref<8x72xbf16, #tpu.memory_space<vmem>>, vector<8x72xbf16>
    %cst_10 = arith.constant dense<0.000000e+00> : vector<8x512xf32>
    %44 = tpu.matmul %43, %42, %cst_10 {dimension_numbers = #tpu.dot_dimension_numbers<[1], [0], [0], [1], [0, 0, 1, 1], [], []>} : vector<8x72xbf16>, vector<72x512xbf16>, vector<8x512xf32> -> vector<8x512xf32>
    %c0_11 = arith.constant 0 : index
    %c0_12 = arith.constant 0 : index
    %45 = vector.load %arg5[%c0_11, %c0_12] : memref<8x1xf32, #tpu.memory_space<vmem>>, vector<8x1xf32>
    %46 = vector.broadcast %45 : vector<8x1xf32> to vector<8x512xf32>
    %47 = arith.addf %44, %46 : vector<8x512xf32>
    %cst_13 = arith.constant 0.000000e+00 : f32
    %48 = vector.broadcast %cst_13 : f32 to vector<8x512xf32>
    %49 = arith.maximumf %47, %48 : vector<8x512xf32>
    %c0_14 = arith.constant 0 : index
    %c0_15 = arith.constant 0 : index
    %50 = vector.load %arg6[%c0_14, %c0_15] : memref<16x8xbf16, #tpu.memory_space<vmem>>, vector<16x8xbf16>
    %51 = arith.truncf %49 : vector<8x512xf32> to vector<8x512xbf16>
    %cst_16 = arith.constant dense<0.000000e+00> : vector<16x512xf32>
    %52 = tpu.matmul %50, %51, %cst_16 {dimension_numbers = #tpu.dot_dimension_numbers<[1], [0], [0], [1], [0, 0, 1, 1], [], []>} : vector<16x8xbf16>, vector<8x512xbf16>, vector<16x512xf32> -> vector<16x512xf32>
    %c0_17 = arith.constant 0 : index
    %c0_18 = arith.constant 0 : index
    %53 = vector.load %arg7[%c0_17, %c0_18] : memref<16x1xf32, #tpu.memory_space<vmem>>, vector<16x1xf32>
    %54 = vector.broadcast %53 : vector<16x1xf32> to vector<16x512xf32>
    %55 = arith.addf %52, %54 : vector<16x512xf32>
    %56 = arith.extf %0 : vector<16x512xbf16> to vector<16x512xf32>
    %57 = arith.addf %55, %56 : vector<16x512xf32>
    %cst_19 = arith.constant 0.000000e+00 : f32
    %58 = vector.broadcast %cst_19 : f32 to vector<16x512xf32>
    %59 = arith.maximumf %57, %58 : vector<16x512xf32>
    %60 = arith.truncf %59 : vector<16x512xf32> to vector<16x512xbf16>
    %c0_20 = arith.constant 0 : index
    %c0_21 = arith.constant 0 : index
    %61 = vector.load %arg9[%c0_20, %c0_21] : memref<16x512xbf16, #tpu.memory_space<vmem>>, vector<16x512xbf16>
    tpu.vector_store %arg9[%c0_20, %c0_21], %60 {strides = array<i32>} : memref<16x512xbf16, #tpu.memory_space<vmem>>, vector<16x512xbf16>,
    return
  }
  func.func @transform_0(%arg0: i32) -> (i32, i32) {
    %c0_i32 = arith.constant 0 : i32
    %c0_i32_0 = arith.constant 0 : i32
    return %c0_i32, %arg0 : i32, i32
  }
  func.func @transform_1(%arg0: i32) -> (i32, i32) {
    %c0_i32 = arith.constant 0 : i32
    %c0_i32_0 = arith.constant 0 : i32
    %c0_i32_1 = arith.constant 0 : i32
    return %c0_i32, %c0_i32_0 : i32, i32
  }
  func.func @transform_2(%arg0: i32) -> (i32, i32) {
    %c0_i32 = arith.constant 0 : i32
    %c0_i32_0 = arith.constant 0 : i32
    %c0_i32_1 = arith.constant 0 : i32
    return %c0_i32, %c0_i32_0 : i32, i32
  }
  func.func @transform_3(%arg0: i32) -> (i32, i32) {
    %c0_i32 = arith.constant 0 : i32
    %c0_i32_0 = arith.constant 0 : i32
    %c0_i32_1 = arith.constant 0 : i32
    return %c0_i32, %c0_i32_0 : i32, i32
  }
  func.func @transform_4(%arg0: i32) -> (i32, i32) {
    %c0_i32 = arith.constant 0 : i32
    %c0_i32_0 = arith.constant 0 : i32
    %c0_i32_1 = arith.constant 0 : i32
    return %c0_i32, %c0_i32_0 : i32, i32
  }
  func.func @transform_5(%arg0: i32) -> (i32, i32) {
    %c0_i32 = arith.constant 0 : i32
    %c0_i32_0 = arith.constant 0 : i32
    %c0_i32_1 = arith.constant 0 : i32
    return %c0_i32, %c0_i32_0 : i32, i32
  }
  func.func @transform_6(%arg0: i32) -> (i32, i32) {
    %c0_i32 = arith.constant 0 : i32
    %c0_i32_0 = arith.constant 0 : i32
    %c0_i32_1 = arith.constant 0 : i32
    return %c0_i32, %c0_i32_0 : i32, i32
  }
  func.func @transform_7(%arg0: i32) -> (i32, i32) {
    %c0_i32 = arith.constant 0 : i32
    %c0_i32_0 = arith.constant 0 : i32
    %c0_i32_1 = arith.constant 0 : i32
    return %c0_i32, %c0_i32_0 : i32, i32
  }
  func.func @transform_8(%arg0: i32) -> (i32, i32) {
    %c0_i32 = arith.constant 0 : i32
    %c0_i32_0 = arith.constant 0 : i32
    return %c0_i32, %arg0 : i32, i32
  }
}

</mosaic_0001>

<llo_original>
// kernel: tpu_custom_call.1
$region0: #{tpu_custom_call.1}
  #allocation0 [shape = 'u32[]', space=smem, size = 0x4, offset = 0x4, fixed_abs, tag = 'smem constant byte address 0x4 - core index']
  #allocation1 [shape = 'u32[72,128]{1,0:T(1,128)}', space=vmem, size = 0x9000, scoped, tag = 'internal scratch']
  %s0 = inlined_call_operand.vmem [shape: bf16[16,512], index: 0, kind: input, shape index: {}]
  %s1 = inlined_call_operand.vmem [shape: bf16[8,16], index: 1, kind: input, shape index: {}]
  %s2 = inlined_call_operand.vmem [shape: f32[8,1], index: 2, kind: input, shape index: {}]
  %s3 = inlined_call_operand.vmem [shape: bf16[8,72], index: 3, kind: input, shape index: {}]
  %s4 = inlined_call_operand.vmem [shape: f32[8,1], index: 4, kind: input, shape index: {}]
  %s5 = inlined_call_operand.vmem [shape: bf16[16,8], index: 5, kind: input, shape index: {}]
  %s6 = inlined_call_operand.vmem [shape: f32[16,1], index: 6, kind: input, shape index: {}]
  %s7 = inlined_call_operand.hbm [shape: f32[9,512], index: 7, kind: input, shape index: {}]
  %s8 = inlined_call_operand.hbm [shape: bf16[16,512], index: 8, kind: output, shape index: {}]
  %s9 = sld [smem:[#allocation0]]
  $region46: #{tpu_custom_call.1} parent=0
    _
  %s11 = ssub.s32 1, %s9
  %s12 = scalar_select 0, %s11, %s9
  $region1: #{tpu_custom_call.1} parent=0
    #allocation2 [shape = 'u8[32768]{0}', space=vmem, size = 0x8000, scoped, tag = 'input window, operand 7, single buffered']
    #allocation3 [shape = 's32[1]{0}', space=sflag, size = 0x4, scoped, tag = 'scoped memory for tpu_custom_call.1']
    #allocation4 [shape = 's32[1]{0}', space=sflag, size = 0x4, scoped, tag = 'scoped memory for tpu_custom_call.1']
    #allocation5 [shape = 'u8[16384]{0}', space=vmem, size = 0x4000, scoped, tag = 'output window, operand 0, single buffered']
    %13 = vsyncpa [#allocation3], 0
    %14 = vsyncpa [#allocation4], 0
    // Predicated region
    $region2: #{tpu_custom_call.1} parent=1 // pred_check
      _
    $region3: #{tpu_custom_call.1} parent=1 // pred_check_branch
      %16 = sbr.rel (0) target = $region5
    $region4: #{tpu_custom_call.1} parent=1 // pred_region
      _
    $region5: #{tpu_custom_call.1} parent=1 // pred_fallthru
      _
    // Predicated region
    $region6: #{tpu_custom_call.1} parent=1 // pred_check
      _
    $region7: #{tpu_custom_call.1} parent=1 // pred_check_branch
      %18 = sbr.rel (0) target = $region9
    $region8: #{tpu_custom_call.1} parent=1 // pred_region
      _
    $region9: #{tpu_custom_call.1} parent=1 // pred_fallthru
      _
    // Predicated region
    $region10: #{tpu_custom_call.1} parent=1 // pred_check
      _
    $region11: #{tpu_custom_call.1} parent=1 // pred_check_branch
      %20 = sbr.rel (0) target = $region13
    $region12: #{tpu_custom_call.1} parent=1 // pred_region
      _
    $region13: #{tpu_custom_call.1} parent=1 // pred_fallthru
      _
    // Predicated region
    $region14: #{tpu_custom_call.1} parent=1 // pred_check
      _
    $region15: #{tpu_custom_call.1} parent=1 // pred_check_branch
      %22 = sbr.rel (0) target = $region17
    $region16: #{tpu_custom_call.1} parent=1 // pred_region
      _
    $region17: #{tpu_custom_call.1} parent=1 // pred_fallthru
      _
    // Predicated region
    $region18: #{tpu_custom_call.1} parent=1 // pred_check
      _
    $region19: #{tpu_custom_call.1} parent=1 // pred_check_branch
      %24 = sbr.rel (0) target = $region21
    $region20: #{tpu_custom_call.1} parent=1 // pred_region
      _
    $region21: #{tpu_custom_call.1} parent=1 // pred_fallthru
      _
    // Predicated region
    $region22: #{tpu_custom_call.1} parent=1 // pred_check
      _
    $region23: #{tpu_custom_call.1} parent=1 // pred_check_branch
      %26 = sbr.rel (0) target = $region25
    $region24: #{tpu_custom_call.1} parent=1 // pred_region
      _
    $region25: #{tpu_custom_call.1} parent=1 // pred_fallthru
      _
    // Predicated region
    $region26: #{tpu_custom_call.1} parent=1 // pred_check
      _
    $region27: #{tpu_custom_call.1} parent=1 // pred_check_branch
      %28 = sbr.rel (0) target = $region29
    $region28: #{tpu_custom_call.1} parent=1 // pred_region
      _
    $region29: #{tpu_custom_call.1} parent=1 // pred_fallthru
      _
    // Predicated region
    $region30: #{tpu_custom_call.1} parent=1 // pred_check
      _
    $region31: #{tpu_custom_call.1} parent=1 // pred_check_branch
      %30 = sbr.rel (0) target = $region33
    $region32: #{tpu_custom_call.1} parent=1 // pred_region
      %32 = vsyncadd [#allocation3], 0
      %s33 = sshll.u32 %s7, 4
      %s34 = int_to_ptr.hbm [resolvable:$true] %s33
      %s35 = sshll.u32 [#allocation2], 4
      %s36 = int_to_ptr.vmem [resolvable:$true] %s35
      %41 = dma.hbm_to_vmem [thread:$0]  %s34, 1024, %s36, [#allocation3], 512, 512, 32
    $region33: #{tpu_custom_call.1} parent=1 // pred_fallthru
      _
    // Predicated region
    $region34: #{tpu_custom_call.1} parent=1 // pred_check
      _
    $region35: #{tpu_custom_call.1} parent=1 // pred_check_branch
      %43 = sbr.rel (0) target = $region37
    $region36: #{tpu_custom_call.1} parent=1 // pred_region
      %45 = dma.done [#allocation3], 1024
    $region37: #{tpu_custom_call.1} parent=1 // pred_fallthru
      _
    %v47 = vld [vmem:[%s0] sm:$0xff]
    %v48 = vld [vmem:[%s0 + $0x8] sm:$0xff]
    %v49 = vld [vmem:[%s0 + $0x10] sm:$0xff]
    %v50 = vld [vmem:[%s0 + $0x18] sm:$0xff]
    %v51 = vld [vmem:[%s1] sm:$0xf]
    %v52 = vld [vmem:[%s2] sm:$0xff]
    %54 = vset.pattern.permute.xlu0 0
    %55 = vperm.xlu0 %54, %v52
    %v56 = vpop.permute.xlu0 %55
    %v62 = vunpack.c.l.b16 %v47
    %v63 = vunpack.c.h.b16 %v47
    %v64 = vunpack.c.l.b16 %v48
    %v65 = vunpack.c.h.b16 %v48
    %v66 = vunpack.c.l.b16 %v49
    %v67 = vunpack.c.h.b16 %v49
    %v68 = vunpack.c.l.b16 %v50
    %v69 = vunpack.c.h.b16 %v50
    %v70 = vpack.c.b16 %v66, %v62
    %v71 = vpack.c.b16 %v67, %v63
    %v72 = vpack.c.b16 %v68, %v64
    %v73 = vpack.c.b16 %v69, %v65
    %vm78 = vcmask 130048
    %v80 = vsel %vm78, %v51, 0
    %82 = vmatpush.bf16.msra.mxu0 0
    %83 = vmatpush.bf16.msra.mxu0 0
    %84 = vmatpush.bf16.msra.mxu0 0
    %85 = vmatpush.bf16.msra.mxu0 0
    %86 = vmatpush.bf16.msra.mxu0 0
    %87 = vmatpush.bf16.msra.mxu0 0
    %88 = vmatpush.bf16.msra.mxu0 0
    %89 = vmatpush.bf16.msra.mxu0 %v70
    %90 = vmatmul.bf16.gmra.mxu0 %v80
    %v91 = vpop.f32.mrf.mxu0
    %v92 = vadd.f32 %v56, %v91
    %v93 = vpop.f32.mrf.mxu0
    %94 = vdwg.mxu0
    %95 = vmatpush.bf16.msra.mxu0 0
    %96 = vmatpush.bf16.msra.mxu0 0
    %97 = vmatpush.bf16.msra.mxu0 0
    %98 = vmatpush.bf16.msra.mxu0 0
    %99 = vmatpush.bf16.msra.mxu0 0
    %100 = vmatpush.bf16.msra.mxu0 0
    %101 = vmatpush.bf16.msra.mxu0 0
    %102 = vmatpush.bf16.msra.mxu0 %v71
    %103 = vmatmul.bf16.gmra.mxu0 %v80
    %v104 = vpop.f32.mrf.mxu0
    %v105 = vadd.f32 %v56, %v104
    %v106 = vpop.f32.mrf.mxu0
    %107 = vdwg.mxu0
    %108 = vmatpush.bf16.msra.mxu0 0
    %109 = vmatpush.bf16.msra.mxu0 0
    %110 = vmatpush.bf16.msra.mxu0 0
    %111 = vmatpush.bf16.msra.mxu0 0
    %112 = vmatpush.bf16.msra.mxu0 0
    %113 = vmatpush.bf16.msra.mxu0 0
    %114 = vmatpush.bf16.msra.mxu0 0
    %115 = vmatpush.bf16.msra.mxu0 %v72
    %116 = vmatmul.bf16.gmra.mxu0 %v80
    %v117 = vpop.f32.mrf.mxu0
    %v118 = vadd.f32 %v56, %v117
    %v119 = vpop.f32.mrf.mxu0
    %120 = vdwg.mxu0
    %121 = vmatpush.bf16.msra.mxu0 0
    %122 = vmatpush.bf16.msra.mxu0 0
    %123 = vmatpush.bf16.msra.mxu0 0
    %124 = vmatpush.bf16.msra.mxu0 0
    %125 = vmatpush.bf16.msra.mxu0 0
    %126 = vmatpush.bf16.msra.mxu0 0
    %127 = vmatpush.bf16.msra.mxu0 0
    %128 = vmatpush.bf16.msra.mxu0 %v73
    %129 = vmatmul.bf16.gmra.mxu0 %v80
    %v130 = vpop.f32.mrf.mxu0
    %v131 = vadd.f32 %v56, %v130
    %v132 = vpop.f32.mrf.mxu0
    %133 = vdwg.mxu0
    %v134 = vmax.f32 %v92, 0.0
    %v135 = vmax.f32 %v105, 0.0
    %v136 = vmax.f32 %v118, 0.0
    %v137 = vmax.f32 %v131, 0.0
    %v138 = vld [vmem:[#allocation2] sm:$0xff]
    %v139 = vld [vmem:[#allocation2 + $0x8] sm:$0xff]
    %v140 = vld [vmem:[#allocation2 + $0x10] sm:$0xff]
    %v141 = vld [vmem:[#allocation2 + $0x18] sm:$0xff]
    %v142 = vld [vmem:[#allocation2 + $0x20] sm:$0x1]
    %v143 = vld [vmem:[#allocation2 + $0x28] sm:$0x1]
    %v144 = vld [vmem:[#allocation2 + $0x30] sm:$0x1]
    %v145 = vld [vmem:[#allocation2 + $0x38] sm:$0x1]
    %146 = vrot.lane.b32.xlu0 %v134, 17
    %v147 = vpop.permute.xlu0 %146
    %148 = vrot.lane.b32.xlu0 %v135, 17
    %v149 = vpop.permute.xlu0 %148
    %150 = vrot.lane.b32.xlu0 %v136, 17
    %v151 = vpop.permute.xlu0 %150
    %152 = vrot.lane.b32.xlu0 %v137, 17
    %v153 = vpop.permute.xlu0 %152
    %v154 = vlaneseq
    %v155 = vand.u32 %v154, 127
    %vm156 = vcmp.lt.s32.totalorder %v155, 17
    %v157 = vsel %vm156, %v151, %v153
    %v158 = vsel %vm156, %v149, %v151
    %v159 = vsel %vm156, %v147, %v149
    %v160 = vsel %vm156, %v153, %v147
    %v161 = vperm.slane %v138, 0
    %v162 = vperm.slane %v139, 0
    %v163 = vperm.slane %v140, 0
    %v164 = vperm.slane %v141, 0
    %v165 = vmul.f32 %v160, %v161
    %v166 = vmul.f32 %v159, %v162
    %v167 = vmul.f32 %v158, %v163
    %v168 = vmul.f32 %v157, %v164
    %169 = vrot.lane.b32.xlu0 %v134, 16
    %v170 = vpop.permute.xlu0 %169
    %171 = vrot.lane.b32.xlu0 %v135, 16
    %v172 = vpop.permute.xlu0 %171
    %173 = vrot.lane.b32.xlu0 %v136, 16
    %v174 = vpop.permute.xlu0 %173
    %175 = vrot.lane.b32.xlu0 %v137, 16
    %v176 = vpop.permute.xlu0 %175
    %vm177 = vcmp.lt.s32.totalorder %v155, 16
    %v178 = vsel %vm177, %v174, %v176
    %v179 = vsel %vm177, %v172, %v174
    %v180 = vsel %vm177, %v170, %v172
    %v181 = vsel %vm177, %v176, %v170
    %v182 = vperm.slane %v138, 1
    %v183 = vperm.slane %v139, 1
    %v184 = vperm.slane %v140, 1
    %v185 = vperm.slane %v141, 1
    %v186 = vmul.f32 %v181, %v182
    %v187 = vmul.f32 %v180, %v183
    %v188 = vmul.f32 %v179, %v184
    %v189 = vmul.f32 %v178, %v185
    %190 = vrot.lane.b32.xlu0 %v134, 15
    %v191 = vpop.permute.xlu0 %190
    %192 = vrot.lane.b32.xlu0 %v135, 15
    %v193 = vpop.permute.xlu0 %192
    %194 = vrot.lane.b32.xlu0 %v136, 15
    %v195 = vpop.permute.xlu0 %194
    %196 = vrot.lane.b32.xlu0 %v137, 15
    %v197 = vpop.permute.xlu0 %196
    %vm198 = vcmp.lt.s32.totalorder %v155, 15
    %v199 = vsel %vm198, %v195, %v197
    %v200 = vsel %vm198, %v193, %v195
    %v201 = vsel %vm198, %v191, %v193
    %v202 = vsel %vm198, %v197, %v191
    %v203 = vperm.slane %v138, 2
    %v204 = vperm.slane %v139, 2
    %v205 = vperm.slane %v140, 2
    %v206 = vperm.slane %v141, 2
    %v207 = vmul.f32 %v202, %v203
    %v208 = vmul.f32 %v201, %v204
    %v209 = vmul.f32 %v200, %v205
    %v210 = vmul.f32 %v199, %v206
    %211 = vrot.lane.b32.xlu0 %v134, 1
    %v212 = vpop.permute.xlu0 %211
    %213 = vrot.lane.b32.xlu0 %v135, 1
    %v214 = vpop.permute.xlu0 %213
    %215 = vrot.lane.b32.xlu0 %v136, 1
    %v216 = vpop.permute.xlu0 %215
    %217 = vrot.lane.b32.xlu0 %v137, 1
    %v218 = vpop.permute.xlu0 %217
    %vm219 = vcmp.lt.s32.totalorder %v155, 1
    %v220 = vsel %vm219, %v216, %v218
    %v221 = vsel %vm219, %v214, %v216
    %v222 = vsel %vm219, %v212, %v214
    %v223 = vsel %vm219, %v218, %v212
    %v224 = vperm.slane %v138, 3
    %v225 = vperm.slane %v139, 3
    %v226 = vperm.slane %v140, 3
    %v227 = vperm.slane %v141, 3
    %v228 = vmul.f32 %v223, %v224
    %v229 = vmul.f32 %v222, %v225
    %v230 = vmul.f32 %v221, %v226
    %v231 = vmul.f32 %v220, %v227
    %232 = vrot.lane.b32.xlu0 %v134, 127
    %v233 = vpop.permute.xlu0 %232
    %234 = vrot.lane.b32.xlu0 %v135, 127
    %v235 = vpop.permute.xlu0 %234
    %236 = vrot.lane.b32.xlu0 %v136, 127
    %v237 = vpop.permute.xlu0 %236
    %238 = vrot.lane.b32.xlu0 %v137, 127
    %v239 = vpop.permute.xlu0 %238
    %vm240 = vcmp.lt.s32.totalorder %v155, 127
    %v241 = vsel %vm240, %v237, %v239
    %v242 = vsel %vm240, %v235, %v237
    %v243 = vsel %vm240, %v233, %v235
    %v244 = vsel %vm240, %v239, %v233
    %v245 = vperm.slane %v138, 5
    %v246 = vperm.slane %v139, 5
    %v247 = vperm.slane %v140, 5
    %v248 = vperm.slane %v141, 5
    %v249 = vmul.f32 %v243, %v245
    %v250 = vmul.f32 %v242, %v246
    %v251 = vmul.f32 %v241, %v247
    %v252 = vmul.f32 %v244, %v248
    %253 = vrot.lane.b32.xlu0 %v134, 113
    %v254 = vpop.permute.xlu0 %253
    %255 = vrot.lane.b32.xlu0 %v135, 113
    %v256 = vpop.permute.xlu0 %255
    %257 = vrot.lane.b32.xlu0 %v136, 113
    %v258 = vpop.permute.xlu0 %257
    %259 = vrot.lane.b32.xlu0 %v137, 113
    %v260 = vpop.permute.xlu0 %259
    %vm261 = vcmp.lt.s32.totalorder %v155, 113
    %v262 = vsel %vm261, %v258, %v260
    %v263 = vsel %vm261, %v256, %v258
    %v264 = vsel %vm261, %v254, %v256
    %v265 = vsel %vm261, %v260, %v254
    %v266 = vperm.slane %v138, 6
    %v267 = vperm.slane %v139, 6
    %v268 = vperm.slane %v140, 6
    %v269 = vperm.slane %v141, 6
    %v270 = vmul.f32 %v264, %v266
    %v271 = vmul.f32 %v263, %v267
    %v272 = vmul.f32 %v262, %v268
    %v273 = vmul.f32 %v265, %v269
    %274 = vrot.lane.b32.xlu0 %v134, 112
    %v275 = vpop.permute.xlu0 %274
    %276 = vrot.lane.b32.xlu0 %v135, 112
    %v277 = vpop.permute.xlu0 %276
    %278 = vrot.lane.b32.xlu0 %v136, 112
    %v279 = vpop.permute.xlu0 %278
    %280 = vrot.lane.b32.xlu0 %v137, 112
    %v281 = vpop.permute.xlu0 %280
    %vm282 = vcmp.lt.s32.totalorder %v155, 112
    %v283 = vsel %vm282, %v279, %v281
    %v284 = vsel %vm282, %v277, %v279
    %v285 = vsel %vm282, %v275, %v277
    %v286 = vsel %vm282, %v281, %v275
    %v287 = vperm.slane %v138, 7
    %v288 = vperm.slane %v139, 7
    %v289 = vperm.slane %v140, 7
    %v290 = vperm.slane %v141, 7
    %v291 = vmul.f32 %v285, %v287
    %v292 = vmul.f32 %v284, %v288
    %v293 = vmul.f32 %v283, %v289
    %v294 = vmul.f32 %v286, %v290
    %295 = vrot.lane.b32.xlu0 %v134, 111
    %v296 = vpop.permute.xlu0 %295
    %297 = vrot.lane.b32.xlu0 %v135, 111
    %v298 = vpop.permute.xlu0 %297
    %299 = vrot.lane.b32.xlu0 %v136, 111
    %v300 = vpop.permute.xlu0 %299
    %301 = vrot.lane.b32.xlu0 %v137, 111
    %v302 = vpop.permute.xlu0 %301
    %vm303 = vcmp.lt.s32.totalorder %v155, 111
    %v304 = vsel %vm303, %v300, %v302
    %v305 = vsel %vm303, %v298, %v300
    %v306 = vsel %vm303, %v296, %v298
    %v307 = vsel %vm303, %v302, %v296
    %v308 = vperm.slane %v142, 0
    %v309 = vperm.slane %v143, 0
    %v310 = vperm.slane %v144, 0
    %v311 = vperm.slane %v145, 0
    %v312 = vmul.f32 %v306, %v308
    %v313 = vmul.f32 %v305, %v309
    %v314 = vmul.f32 %v304, %v310
    %v315 = vmul.f32 %v307, %v311
    %v316 = vpack.c.bf16 %v186, %v165
    %v317 = vpack.c.bf16 %v187, %v166
    %v318 = vpack.c.bf16 %v188, %v167
    %v319 = vpack.c.bf16 %v189, %v168
    %v320 = vpack.c.bf16 %v228, %v207
    %v321 = vpack.c.bf16 %v229, %v208
    %v322 = vpack.c.bf16 %v230, %v209
    %v323 = vpack.c.bf16 %v231, %v210
    %v324 = vpack.c.bf16 %v249, %v134
    %v325 = vpack.c.bf16 %v250, %v135
    %v326 = vpack.c.bf16 %v251, %v136
    %v327 = vpack.c.bf16 %v252, %v137
    %v328 = vpack.c.bf16 %v291, %v270
    %v329 = vpack.c.bf16 %v292, %v271
    %v330 = vpack.c.bf16 %v293, %v272
    %v331 = vpack.c.bf16 %v294, %v273
    %v332 = vpack.c.bf16 %v312, %v312
    %v333 = vpack.c.bf16 %v313, %v313
    %v334 = vpack.c.bf16 %v314, %v314
    %v335 = vpack.c.bf16 %v315, %v315
    %v336 = vld [vmem:[%s3] sm:$0xf]
    %v337 = vld [vmem:[%s4] sm:$0xff]
    %339 = vset.pattern.permute.xlu0 0
    %340 = vperm.xlu0 %339, %v337
    %v341 = vpop.permute.xlu0 %340
    %vm343 = vcmask 588800
    %v345 = vsel %vm343, %v336, 0
    %vm347 = vcmask 1043456
    %v349 = vsel %vm347, %v332, 0
    %v352 = vsel %vm347, %v333, 0
    %v355 = vsel %vm347, %v334, 0
    %v358 = vsel %vm347, %v335, 0
    %360 = vmatpush.bf16.msra.mxu0 0
    %361 = vmatpush.bf16.msra.mxu0 0
    %362 = vmatpush.bf16.msra.mxu0 0
    %363 = vmatpush.bf16.msra.mxu0 %v349
    %364 = vmatpush.bf16.msra.mxu0 %v328
    %365 = vmatpush.bf16.msra.mxu0 %v324
    %366 = vmatpush.bf16.msra.mxu0 %v320
    %367 = vmatpush.bf16.msra.mxu0 %v316
    %368 = vmatmul.bf16.gmra.mxu0 %v345
    %v369 = vpop.f32.mrf.mxu0
    %v370 = vadd.f32 %v341, %v369
    %v371 = vpop.f32.mrf.mxu0
    %372 = vdwg.mxu0
    %373 = vmatpush.bf16.msra.mxu0 0
    %374 = vmatpush.bf16.msra.mxu0 0
    %375 = vmatpush.bf16.msra.mxu0 0
    %376 = vmatpush.bf16.msra.mxu0 %v352
    %377 = vmatpush.bf16.msra.mxu0 %v329
    %378 = vmatpush.bf16.msra.mxu0 %v325
    %379 = vmatpush.bf16.msra.mxu0 %v321
    %380 = vmatpush.bf16.msra.mxu0 %v317
    %381 = vmatmul.bf16.gmra.mxu0 %v345
    %v382 = vpop.f32.mrf.mxu0
    %v383 = vadd.f32 %v341, %v382
    %v384 = vpop.f32.mrf.mxu0
    %385 = vdwg.mxu0
    %386 = vmatpush.bf16.msra.mxu0 0
    %387 = vmatpush.bf16.msra.mxu0 0
    %388 = vmatpush.bf16.msra.mxu0 0
    %389 = vmatpush.bf16.msra.mxu0 %v355
    %390 = vmatpush.bf16.msra.mxu0 %v330
    %391 = vmatpush.bf16.msra.mxu0 %v326
    %392 = vmatpush.bf16.msra.mxu0 %v322
    %393 = vmatpush.bf16.msra.mxu0 %v318
    %394 = vmatmul.bf16.gmra.mxu0 %v345
    %v395 = vpop.f32.mrf.mxu0
    %v396 = vadd.f32 %v341, %v395
    %v397 = vpop.f32.mrf.mxu0
    %398 = vdwg.mxu0
    %399 = vmatpush.bf16.msra.mxu0 0
    %400 = vmatpush.bf16.msra.mxu0 0
    %401 = vmatpush.bf16.msra.mxu0 0
    %402 = vmatpush.bf16.msra.mxu0 %v358
    %403 = vmatpush.bf16.msra.mxu0 %v331
    %404 = vmatpush.bf16.msra.mxu0 %v327
    %405 = vmatpush.bf16.msra.mxu0 %v323
    %406 = vmatpush.bf16.msra.mxu0 %v319
    %407 = vmatmul.bf16.gmra.mxu0 %v345
    %v408 = vpop.f32.mrf.mxu0
    %v409 = vadd.f32 %v341, %v408
    %v410 = vpop.f32.mrf.mxu0
    %411 = vdwg.mxu0
    %v412 = vmax.f32 %v370, 0.0
    %v413 = vmax.f32 %v383, 0.0
    %v414 = vmax.f32 %v396, 0.0
    %v415 = vmax.f32 %v409, 0.0
    %v416 = vld [vmem:[%s5] sm:$0xf]
    %v417 = vld [vmem:[%s5 + $0x4] sm:$0xf]
    %v418 = vpack.c.bf16 %v412, %v412
    %v419 = vpack.c.bf16 %v413, %v413
    %v420 = vpack.c.bf16 %v414, %v414
    %v421 = vpack.c.bf16 %v415, %v415
    %v422 = vld [vmem:[%s6] sm:$0xff]
    %v423 = vld [vmem:[%s6 + $0x8] sm:$0xff]
    %425 = vset.pattern.permute.xlu0 0
    %426 = vperm.xlu0 %425, %v422
    %v427 = vpop.permute.xlu0 %426
    %430 = vset.pattern.permute.xlu0 0
    %431 = vperm.xlu0 %430, %v423
    %v432 = vpop.permute.xlu0 %431
    %v436 = vunpack.c.l.b16 %v416
    %v437 = vunpack.c.l.b16 %v417
    %v438 = vpack.c.b16 %v437, %v436
    %vm439 = vcmask 64512
    %v441 = vsel %vm439, %v438, 0
    %v444 = vsel %vm347, %v418, 0
    %v447 = vsel %vm347, %v419, 0
    %v450 = vsel %vm347, %v420, 0
    %v453 = vsel %vm347, %v421, 0
    %455 = vmatpush.bf16.msra.mxu0 0
    %456 = vmatpush.bf16.msra.mxu0 0
    %457 = vmatpush.bf16.msra.mxu0 0
    %458 = vmatpush.bf16.msra.mxu0 0
    %459 = vmatpush.bf16.msra.mxu0 0
    %460 = vmatpush.bf16.msra.mxu0 0
    %461 = vmatpush.bf16.msra.mxu0 0
    %462 = vmatpush.bf16.msra.mxu0 %v444
    %463 = vmatmul.bf16.gmra.mxu0 %v441
    %v464 = vpop.f32.mrf.mxu0
    %v465 = vadd.f32 %v427, %v464
    %v466 = vpop.f32.mrf.mxu0
    %v467 = vadd.f32 %v432, %v466
    %468 = vdwg.mxu0
    %469 = vmatpush.bf16.msra.mxu0 0
    %470 = vmatpush.bf16.msra.mxu0 0
    %471 = vmatpush.bf16.msra.mxu0 0
    %472 = vmatpush.bf16.msra.mxu0 0
    %473 = vmatpush.bf16.msra.mxu0 0
    %474 = vmatpush.bf16.msra.mxu0 0
    %475 = vmatpush.bf16.msra.mxu0 0
    %476 = vmatpush.bf16.msra.mxu0 %v447
    %477 = vmatmul.bf16.gmra.mxu0 %v441
    %v478 = vpop.f32.mrf.mxu0
    %v479 = vadd.f32 %v427, %v478
    %v480 = vpop.f32.mrf.mxu0
    %v481 = vadd.f32 %v432, %v480
    %482 = vdwg.mxu0
    %483 = vmatpush.bf16.msra.mxu0 0
    %484 = vmatpush.bf16.msra.mxu0 0
    %485 = vmatpush.bf16.msra.mxu0 0
    %486 = vmatpush.bf16.msra.mxu0 0
    %487 = vmatpush.bf16.msra.mxu0 0
    %488 = vmatpush.bf16.msra.mxu0 0
    %489 = vmatpush.bf16.msra.mxu0 0
    %490 = vmatpush.bf16.msra.mxu0 %v450
    %491 = vmatmul.bf16.gmra.mxu0 %v441
    %v492 = vpop.f32.mrf.mxu0
    %v493 = vadd.f32 %v427, %v492
    %v494 = vpop.f32.mrf.mxu0
    %v495 = vadd.f32 %v432, %v494
    %496 = vdwg.mxu0
    %497 = vmatpush.bf16.msra.mxu0 0
    %498 = vmatpush.bf16.msra.mxu0 0
    %499 = vmatpush.bf16.msra.mxu0 0
    %500 = vmatpush.bf16.msra.mxu0 0
    %501 = vmatpush.bf16.msra.mxu0 0
    %502 = vmatpush.bf16.msra.mxu0 0
    %503 = vmatpush.bf16.msra.mxu0 0
    %504 = vmatpush.bf16.msra.mxu0 %v453
    %505 = vmatmul.bf16.gmra.mxu0 %v441
    %v506 = vpop.f32.mrf.mxu0
    %v507 = vadd.f32 %v427, %v506
    %v508 = vpop.f32.mrf.mxu0
    %v509 = vadd.f32 %v432, %v508
    %510 = vdwg.mxu0
    %v511 = vunpack.c.l.bf16 %v47
    %v512 = vunpack.c.h.bf16 %v47
    %v513 = vunpack.c.l.bf16 %v48
    %v514 = vunpack.c.h.bf16 %v48
    %v515 = vunpack.c.l.bf16 %v49
    %v516 = vunpack.c.h.bf16 %v49
    %v517 = vunpack.c.l.bf16 %v50
    %v518 = vunpack.c.h.bf16 %v50
    %v519 = vadd.f32 %v465, %v511
    %v520 = vadd.f32 %v479, %v512
    %v521 = vadd.f32 %v493, %v513
    %v522 = vadd.f32 %v507, %v514
    %v523 = vadd.f32 %v467, %v515
    %v524 = vadd.f32 %v481, %v516
    %v525 = vadd.f32 %v495, %v517
    %v526 = vadd.f32 %v509, %v518
    %v527 = vmax.f32 %v519, 0.0
    %v528 = vmax.f32 %v520, 0.0
    %v529 = vmax.f32 %v521, 0.0
    %v530 = vmax.f32 %v522, 0.0
    %v531 = vmax.f32 %v523, 0.0
    %v532 = vmax.f32 %v524, 0.0
    %v533 = vmax.f32 %v525, 0.0
    %v534 = vmax.f32 %v526, 0.0
    %v535 = vpack.c.bf16 %v528, %v527
    %v536 = vpack.c.bf16 %v530, %v529
    %v537 = vpack.c.bf16 %v532, %v531
    %v538 = vpack.c.bf16 %v534, %v533
    %539 = vst [vmem:[#allocation5] sm:$0xff] %v535
    %540 = vst [vmem:[#allocation5 + $0x8] sm:$0xff] %v536
    %541 = vst [vmem:[#allocation5 + $0x10] sm:$0xff] %v537
    %542 = vst [vmem:[#allocation5 + $0x18] sm:$0xff] %v538
    // Predicated region
    $region38: #{tpu_custom_call.1} parent=1 // pred_check
      _
    $region39: #{tpu_custom_call.1} parent=1 // pred_check_branch
      %544 = sbr.rel (0) target = $region41
    $region40: #{tpu_custom_call.1} parent=1 // pred_region
      %546 = vsyncadd [#allocation4], 0
      %s547 = sshll.u32 [#allocation5], 4
      %s548 = int_to_ptr.vmem [resolvable:$true] %s547
      %s549 = sshll.u32 %s8, 4
      %s550 = int_to_ptr.hbm [resolvable:$true] %s549
      %555 = dma.vmem_to_hbm [thread:$0]  %s548, 512, %s550, [#allocation4], 256, 256, 16
    $region41: #{tpu_custom_call.1} parent=1 // pred_fallthru
      _
    // Predicated region
    $region42: #{tpu_custom_call.1} parent=1 // pred_check
      _
    $region43: #{tpu_custom_call.1} parent=1 // pred_check_branch
      %557 = sbr.rel (0) target = $region45
    $region44: #{tpu_custom_call.1} parent=1 // pred_region
      %559 = dma.done [#allocation4], 512
    $region45: #{tpu_custom_call.1} parent=1 // pred_fallthru
      _
    %560 = vsyncpa [#allocation3], 1
    %561 = vsyncpa [#allocation4], 1

</llo_original>
